<compile_context>
chip_gen: v7x
topology: tpu7x:2x2x1
jax: 0.10.0
libtpu: 0.0.40
codegen_flags: <defaults>
</compile_context>

<pallas_src>
import jax
import jax.numpy as jnp
from jax.experimental import pallas as pl
from jax.experimental.pallas import tpu as pltpu


def linear_kernel(x_ref, w_ref, b_ref, o_ref):
    # x_ref: [TB, D] (VMEM)   w_ref: [1, D] (VMEM, resident across grid steps)
    # b_ref: [1]     (SMEM)   o_ref: [TB, 1] (VMEM)
    x = x_ref[...]
    w = w_ref[...]                                    # [1, D] broadcasts over rows
    acc = jnp.sum(x * w, axis=-1, keepdims=True)      # VPU mul + XLU lane reduce
    o_ref[...] = (acc + b_ref[0]).astype(o_ref.dtype)


def regression_forward(x, weight, bias, *, tile_rows=None):
    """x: [B, D]; weight: [1, D] (PyTorch nn.Linear layout); bias: [1] -> [B, 1]."""
    x = x.astype(jnp.float32)
    B, D = x.shape
    w = weight.reshape(1, D).astype(jnp.float32)      # keep natural lane-major layout
    b = bias.reshape(1).astype(jnp.float32)

    # --- batch-tile selection ------------------------------------------------
    # Double-buffered f32 x tile must fit comfortably in scoped VMEM on every
    # generation (v5e default 16 MiB scoped, v7x 64 MiB physical): target
    # <= ~6 MiB per buffer, capped at 1024 rows (per-step ~0.35 us overhead is
    # fully amortized well before that).
    if tile_rows is None:
        target_tile_bytes = 6 * 1024 * 1024
        tb = (target_tile_bytes // (D * 4)) // 8 * 8
        b8 = ((B + 7) // 8) * 8                       # sublane-aligned batch
        tb = int(max(8, min(tb, 1024, b8)))
    else:
        tb = int(tile_rows)
        assert tb % 8 == 0, "tile_rows must be a multiple of 8 (sublanes)"

    b_pad = pl.cdiv(B, tb) * tb
    if b_pad != B:
        x = jnp.pad(x, ((0, b_pad - B), (0, 0)))      # zero rows -> sliced away below

    # NOTE: if D were very large, add a second (last, "arbitrary") grid axis over
    # D with a VMEM accumulator + pl.when init/finalize.  Not needed for D=8.
    # NOTE: x could optionally be streamed as bf16 to halve HBM bytes; kept f32
    # here to exactly match the PyTorch module's numerics.
    out = pl.pallas_call(
        linear_kernel,
        out_shape=jax.ShapeDtypeStruct((b_pad, 1), jnp.float32),
        grid=(b_pad // tb,),
        in_specs=[
            pl.BlockSpec((tb, D), lambda i: (i, 0)),               # streamed x tiles
            pl.BlockSpec((1, D), lambda i: (0, 0)),                # resident weight
            pl.BlockSpec(memory_space=pltpu.MemorySpace.SMEM),     # scalar bias
        ],
        out_specs=pl.BlockSpec((tb, 1), lambda i: (i, 0)),
        compiler_params=pltpu.CompilerParams(
            dimension_semantics=("parallel",),        # megacore-split batch on v7x
            vmem_limit_bytes=48 * 1024 * 1024,
        ),
    )(x, w, b)
    return out[:B]


if __name__ == "__main__":
    input_dim = 8
    batch = 20          # non-multiple of 8 -> exercises padding + multi-step grid

    key = jax.random.PRNGKey(0)
    kx, kw, kb = jax.random.split(key, 3)

    # Deterministic synthetic parameters (shapes match nn.Linear(input_dim, 1)).
    x = jax.random.normal(kx, (batch, input_dim), dtype=jnp.float32)
    bound = 1.0 / float(input_dim) ** 0.5
    weight = jax.random.uniform(kw, (1, input_dim), jnp.float32, -bound, bound)
    bias = jax.random.uniform(kb, (1,), jnp.float32, -bound, bound)

    # Small tile to force several pipelined grid steps at this toy size;
    # production use leaves tile_rows=None for auto (VMEM-budget) sizing.
    out = regression_forward(x, weight, bias, tile_rows=8)
    out = jax.block_until_ready(out)

    # Cross-check against plain JAX reference.
    ref = x @ weight.T + bias
    assert out.shape == (batch, 1)
    assert jnp.allclose(out, ref, atol=1e-5), "mismatch vs reference"

    print("KERNEL_OK")
</pallas_src>

<mosaic_0001>
module attributes {stable_mosaic.version = 11 : i64} {
  func.func @linear_kernel(%arg0: i32, %arg1: memref<8x8xf32, #tpu.memory_space<vmem>>, %arg2: memref<1x8xf32, #tpu.memory_space<vmem>>, %arg3: memref<1xf32, #tpu.memory_space<smem>>, %arg4: memref<8x1xf32, #tpu.memory_space<vmem>>) attributes {dimension_semantics = [#tpu.dimension_semantics<parallel>], iteration_bounds = array<i64: 3>, scalar_prefetch = 0 : i64, scratch_operands = 0 : i64, tpu.core_type = #tpu.core_type<tc>, window_params = [{transform_indices = @transform_0, window_bounds = array<i64: 8, 8>}, {pipeline_mode = #tpu.pipeline_mode<synchronous>, transform_indices = @transform_1, window_bounds = array<i64: 1, 8>}, {transform_indices = @transform_2, window_bounds = array<i64: 1>}, {transform_indices = @transform_3, window_bounds = array<i64: 8, 1>}]} {
    %c0 = arith.constant 0 : index
    %c0_0 = arith.constant 0 : index
    %0 = vector.load %arg1[%c0, %c0_0] : memref<8x8xf32, #tpu.memory_space<vmem>>, vector<8x8xf32>
    %c0_1 = arith.constant 0 : index
    %c0_2 = arith.constant 0 : index
    %1 = vector.load %arg2[%c0_1, %c0_2] : memref<1x8xf32, #tpu.memory_space<vmem>>, vector<1x8xf32>
    %2 = vector.broadcast %1 : vector<1x8xf32> to vector<8x8xf32>
    %3 = arith.mulf %0, %2 : vector<8x8xf32>
    %cst = arith.constant dense<0.000000e+00> : vector<8xf32>
    %4 = vector.multi_reduction <add>, %3, %cst [1] : vector<8x8xf32> to vector<8xf32>
    %5 = vector.shape_cast %4 : vector<8xf32> to vector<8x1xf32>
    %c0_3 = arith.constant 0 : index
    %6 = memref.load %arg3[%c0_3] : memref<1xf32, #tpu.memory_space<smem>>
    %7 = vector.broadcast %6 : f32 to vector<8x1xf32>
    %8 = arith.addf %5, %7 : vector<8x1xf32>
    %c0_4 = arith.constant 0 : index
    %c0_5 = arith.constant 0 : index
    %9 = vector.load %arg4[%c0_4, %c0_5] : memref<8x1xf32, #tpu.memory_space<vmem>>, vector<8x1xf32>
    tpu.vector_store %arg4[%c0_4, %c0_5], %8 {strides = array<i32>} : memref<8x1xf32, #tpu.memory_space<vmem>>, vector<8x1xf32>,
    return
  }
  func.func @transform_0(%arg0: i32) -> (i32, i32) {
    %c0_i32 = arith.constant 0 : i32
    %c0_i32_0 = arith.constant 0 : i32
    return %arg0, %c0_i32 : i32, i32
  }
  func.func @transform_1(%arg0: i32) -> (i32, i32) {
    %c0_i32 = arith.constant 0 : i32
    %c0_i32_0 = arith.constant 0 : i32
    %c0_i32_1 = arith.constant 0 : i32
    return %c0_i32, %c0_i32_0 : i32, i32
  }
  func.func @transform_2(%arg0: i32) -> i32 {
    %c0_i32 = arith.constant 0 : i32
    %c0_i32_0 = arith.constant 0 : i32
    return %c0_i32 : i32
  }
  func.func @transform_3(%arg0: i32) -> (i32, i32) {
    %c0_i32 = arith.constant 0 : i32
    %c0_i32_0 = arith.constant 0 : i32
    return %arg0, %c0_i32 : i32, i32
  }
}

</mosaic_0001>

<llo_original>
// kernel: tpu_custom_call.1
$region0: #{tpu_custom_call.1}
  #allocation0 [shape = 'u32[]', space=smem, size = 0x4, offset = 0x4, fixed_abs, tag = 'smem constant byte address 0x4 - core index']
  #allocation1 [shape = 'u32[144,128]{1,0:T(1,128)}', space=vmem, size = 0x12000, scoped, tag = 'internal scratch']
  #allocation2 [shape = 'f32[1]{0:T(128)S(6)}', space=smem, size = 0x200, scoped, tag = 'scoped memory for tpu_custom_call.1']
  %s0 = inlined_call_operand.vmem [shape: f32[24,8], index: 0, kind: input, shape index: {}]
  %s1 = inlined_call_operand.vmem [shape: f32[1,8], index: 1, kind: input, shape index: {}]
  %s2 = inlined_call_operand.<no memory space> [shape: f32[1], index: 2, kind: input, shape index: {}]
  %s3 = inlined_call_operand.vmem [shape: f32[24,1], index: 3, kind: output, shape index: {}]
  %s4 = sld [smem:[#allocation0]]
  $region45: #{tpu_custom_call.1} parent=0
    _
  %s6 = ssub.s32 1, %s4
  %s7 = scalar_select 0, %s6, %s4
  %8 = sst [smem:[#allocation2]] %s2
  loop: start=0, step=1, limit=5
  $region2: #{tpu_custom_call.1} parent=0 // loop_pre_header
    _
  $region3: #{tpu_custom_call.1} parent=0 // loop_header
    %s10 = sphi 0, %s14
    %p11 = scmp.ge.s32.totalorder %s10, 5
    %s20 = sphi 0, %s22
    %s23 = sphi 0, %s20
    %s24 = sphi 0, %s23
    %s40 = sphi 0, %s24
    %s44 = sphi 0, %s44
    %s46 = sphi 0, %s44
    %s47 = sphi 0, %s46
    %s61 = sphi 0, %s47
    %s65 = sphi 0, %s65
    %s67 = sphi 0, %s65
    %s68 = sphi 0, %s67
    %s82 = sphi 0, %s68
    %s88 = sphi 0, %s90
    %s91 = sphi 0, %s88
    %s92 = sphi 0, %s91
    %s108 = sphi 0, %s92
  $region4: #{tpu_custom_call.1} parent=0 // loop_header_branch
    %13 = sbr.rel (%p11) target = $region8
  $region5: #{tpu_custom_call.1} parent=0 // loop_body
    %s15 = ssub.s32 %s10, 1
    %s16 = ssub.s32 %s10, 2
    %s17 = sadd.s32 %s10, 1
    %s18 = ssub.s32 %s10, %s17
    %p19 = scmp.eq.s32.totalorder %s18, 0
    %s21 = sadd.s32 %s20, 1
    %s22 = scalar_select %p19, %s20, %s21
    %p25 = pneg %p19
    %p26 = scmp.eq.s32.totalorder %s10, 2
    %p27 = por %p25, %p26
    %p28 = scmp.ne.s32.totalorder %s20, %s23
    %p29 = scmp.eq.s32.totalorder %s10, 0
    %p30 = por %p28, %p29
    %p31 = scmp.ne.s32.totalorder %s20, %s23
    %p32 = scmp.eq.s32.totalorder %s15, 2
    %p33 = por %p31, %p32
    %p34 = scmp.ne.s32.totalorder %s23, %s24
    %p35 = scmp.eq.s32.totalorder %s15, 0
    %p36 = por %p34, %p35
    %p37 = scmp.ne.s32.totalorder %s23, %s24
    %p38 = scmp.eq.s32.totalorder %s16, 2
    %p39 = por %p37, %p38
    %p41 = scmp.ne.s32.totalorder %s24, %s40
    %p42 = scmp.eq.s32.totalorder %s16, 0
    %p43 = por %p41, %p42
    %s45 = sadd.s32 %s44, 1
    %p48 = scmp.eq.s32.totalorder %s10, 2
    %p49 = scmp.ne.s32.totalorder %s44, %s46
    %p50 = scmp.eq.s32.totalorder %s10, 0
    %p51 = por %p49, %p50
    %p52 = scmp.ne.s32.totalorder %s44, %s46
    %p53 = scmp.eq.s32.totalorder %s15, 2
    %p54 = por %p52, %p53
    %p55 = scmp.ne.s32.totalorder %s46, %s47
    %p56 = scmp.eq.s32.totalorder %s15, 0
    %p57 = por %p55, %p56
    %p58 = scmp.ne.s32.totalorder %s46, %s47
    %p59 = scmp.eq.s32.totalorder %s16, 2
    %p60 = por %p58, %p59
    %p62 = scmp.ne.s32.totalorder %s47, %s61
    %p63 = scmp.eq.s32.totalorder %s16, 0
    %p64 = por %p62, %p63
    %s66 = sadd.s32 %s65, 1
    %p69 = scmp.eq.s32.totalorder %s10, 2
    %p70 = scmp.ne.s32.totalorder %s65, %s67
    %p71 = scmp.eq.s32.totalorder %s10, 0
    %p72 = por %p70, %p71
    %p73 = scmp.ne.s32.totalorder %s65, %s67
    %p74 = scmp.eq.s32.totalorder %s15, 2
    %p75 = por %p73, %p74
    %p76 = scmp.ne.s32.totalorder %s67, %s68
    %p77 = scmp.eq.s32.totalorder %s15, 0
    %p78 = por %p76, %p77
    %p79 = scmp.ne.s32.totalorder %s67, %s68
    %p80 = scmp.eq.s32.totalorder %s16, 2
    %p81 = por %p79, %p80
    %p83 = scmp.ne.s32.totalorder %s68, %s82
    %p84 = scmp.eq.s32.totalorder %s16, 0
    %p85 = por %p83, %p84
    %s86 = ssub.s32 %s10, %s17
    %p87 = scmp.eq.s32.totalorder %s86, 0
    %s89 = sadd.s32 %s88, 1
    %s90 = scalar_select %p87, %s88, %s89
    %p93 = pneg %p87
    %p94 = scmp.eq.s32.totalorder %s10, 2
    %p95 = por %p93, %p94
    %p96 = scmp.ne.s32.totalorder %s88, %s91
    %p97 = scmp.eq.s32.totalorder %s10, 0
    %p98 = por %p96, %p97
    %p99 = scmp.ne.s32.totalorder %s88, %s91
    %p100 = scmp.eq.s32.totalorder %s15, 2
    %p101 = por %p99, %p100
    %p102 = scmp.ne.s32.totalorder %s91, %s92
    %p103 = scmp.eq.s32.totalorder %s15, 0
    %p104 = por %p102, %p103
    %p105 = scmp.ne.s32.totalorder %s91, %s92
    %p106 = scmp.eq.s32.totalorder %s16, 2
    %p107 = por %p105, %p106
    %p109 = scmp.ne.s32.totalorder %s92, %s108
    %p110 = scmp.eq.s32.totalorder %s16, 0
    %p111 = por %p109, %p110
    %p112 = scmp.le.s32.totalorder 1, %s10
    %p113 = scmp.lt.s32.totalorder %s10, 4
    %p114 = pnand %p112, %p113
    %p115 = pneg %p114
    // Predicated region
    $region9: #{tpu_custom_call.1} parent=5 // pred_check
      _
    $region10: #{tpu_custom_call.1} parent=5 // pred_check_branch
      %117 = sbr.rel (%p114) target = $region12
    $region11: #{tpu_custom_call.1} parent=5 // pred_region
      %s118 = ssub.s32 %s10, 1
      // Predicated region
      $region13: #{tpu_custom_call.1} parent=11 // pred_check
        %p119 = pneg %p57
      $region14: #{tpu_custom_call.1} parent=11 // pred_check_branch
        %121 = sbr.rel (%p119) target = $region16
      $region15: #{tpu_custom_call.1} parent=11 // pred_region
        _
      $region16: #{tpu_custom_call.1} parent=11 // pred_fallthru
        _
      // Predicated region
      $region17: #{tpu_custom_call.1} parent=11 // pred_check
        %p122 = pneg %p78
      $region18: #{tpu_custom_call.1} parent=11 // pred_check_branch
        %124 = sbr.rel (%p122) target = $region20
      $region19: #{tpu_custom_call.1} parent=11 // pred_region
        _
      $region20: #{tpu_custom_call.1} parent=11 // pred_fallthru
        _
    $region12: #{tpu_custom_call.1} parent=5 // pred_fallthru
      _
    %p125 = scmp.lt.s32.totalorder %s10, 3
    // Predicated region
    $region21: #{tpu_custom_call.1} parent=5 // pred_check
      %p126 = pneg %p125
    $region22: #{tpu_custom_call.1} parent=5 // pred_check_branch
      %128 = sbr.rel (%p126) target = $region24
    $region23: #{tpu_custom_call.1} parent=5 // pred_region
      // Predicated region
      $region25: #{tpu_custom_call.1} parent=23 // pred_check
        %p129 = pneg %p30
      $region26: #{tpu_custom_call.1} parent=23 // pred_check_branch
        %131 = sbr.rel (%p129) target = $region28
      $region27: #{tpu_custom_call.1} parent=23 // pred_region
        %p132 = scmp.lt.s32.totalorder %s10, 2
        %s133 = scalar_select %p132, %s10, 2
        %s134 = smul.addr %s133, 8
        %s135 = scalar_lea.vmem %s0, %s134
      $region28: #{tpu_custom_call.1} parent=23 // pred_fallthru
        _
    $region24: #{tpu_custom_call.1} parent=5 // pred_fallthru
      _
    %p136 = scmp.le.s32.totalorder 1, %s10
    %p137 = scmp.lt.s32.totalorder %s10, 4
    %p138 = pnand %p136, %p137
    %p139 = pneg %p138
    // Predicated region
    $region29: #{tpu_custom_call.1} parent=5 // pred_check
      _
    $region30: #{tpu_custom_call.1} parent=5 // pred_check_branch
      %141 = sbr.rel (%p138) target = $region32
    $region31: #{tpu_custom_call.1} parent=5 // pred_region
      %s142 = ssub.s32 %s10, 1
      %p143 = scmp.lt.s32.totalorder %s15, 2
      %s144 = scalar_select %p143, %s15, 2
      %s145 = smul.addr %s144, 8
      %s146 = scalar_lea.vmem %s0, %s145
      %p147 = pneg %p36
      %p148 = pneg %p33
      %p149 = pneg %p57
      %p150 = pneg %p54
      %p151 = pneg %p78
      %p152 = pneg %p75
      %p153 = pneg %p104
      %p154 = pneg %p101
      %p155 = scmp.lt.s32.totalorder %s15, 2
      %s156 = scalar_select %p155, %s15, 2
      %s157 = smul.addr %s156, 8
      %s158 = scalar_lea.vmem %s3, %s157
      %p159 = scmp.lt.s32.totalorder %s15, 2
      %s160 = scalar_select %p159, %s15, 2
      %s161 = smul.addr %s160, 8
      %s162 = scalar_lea.vmem %s0, %s161
      %p163 = scmp.lt.s32.totalorder %s15, 2
      %s164 = scalar_select %p163, %s15, 2
      %s165 = smul.addr %s164, 8
      %s166 = scalar_lea.vmem %s3, %s165
      %v167 = vld [vmem:[%s162] sm:$0xff]
      %v168 = vld [vmem:[%s1] sm:$0x1]
      %v170 = vlaneseq
      %v171 = vshrl.u32 %v170, 7
      %v172 = vsub.s32 0, %v171
      %v173 = vrot.slane %v168, %v172
      %v175 = vmul.f32 %v167, %v173
      %vm176 = vcmask 64512
      %v177 = vsel %vm176, %v175, 0.0
      %178 = vadd.xlane.f32.xlu0 %v177
      %v179 = vpop.xlane.xlu0 %178
      %s180 = sld [smem:[#allocation2]]
      %v181 = vstv %s180
      %v182 = vadd.f32 %v179, %v181
      %vm183 = vcmask 7168
      %184 = vst.msk [vmem:[%s166] sm:$0xff] %vm183, %v182
      %p185 = scmp.lt.s32.totalorder %s15, 2
      %s186 = scalar_select %p185, %s15, 2
      %s187 = smul.addr %s186, 8
      %s188 = scalar_lea.vmem %s3, %s187
      // Predicated region
      $region33: #{tpu_custom_call.1} parent=31 // pred_check
        %p189 = pneg %p101
      $region34: #{tpu_custom_call.1} parent=31 // pred_check_branch
        %191 = sbr.rel (%p189) target = $region36
      $region35: #{tpu_custom_call.1} parent=31 // pred_region
        _
      $region36: #{tpu_custom_call.1} parent=31 // pred_fallthru
        _
    $region32: #{tpu_custom_call.1} parent=5 // pred_fallthru
      _
    %p192 = scmp.le.s32.totalorder 2, %s10
    // Predicated region
    $region37: #{tpu_custom_call.1} parent=5 // pred_check
      %p193 = pneg %p192
    $region38: #{tpu_custom_call.1} parent=5 // pred_check_branch
      %195 = sbr.rel (%p193) target = $region40
    $region39: #{tpu_custom_call.1} parent=5 // pred_region
      %s196 = ssub.s32 %s10, 2
      // Predicated region
      $region41: #{tpu_custom_call.1} parent=39 // pred_check
        %p197 = pneg %p107
      $region42: #{tpu_custom_call.1} parent=39 // pred_check_branch
        %199 = sbr.rel (%p197) target = $region44
      $region43: #{tpu_custom_call.1} parent=39 // pred_region
        %p200 = scmp.lt.s32.totalorder %s16, 2
        %s201 = scalar_select %p200, %s16, 2
        %s202 = smul.addr %s201, 8
        %s203 = scalar_lea.vmem %s3, %s202
      $region44: #{tpu_custom_call.1} parent=39 // pred_fallthru
        _
    $region40: #{tpu_custom_call.1} parent=5 // pred_fallthru
      _
  $region6: #{tpu_custom_call.1} parent=0 // loop_footer
    %s14 = sadd.s32 1, %s10
  $region7: #{tpu_custom_call.1} parent=0 // loop_footer_branch
    %9 = sbr.rel target = $region3
  $region8: #{tpu_custom_call.1} parent=0 // loop_exit
    _

</llo_original>
